<compile_context>
chip_gen: v7x
topology: tpu7x:2x2x1
jax: 0.10.0
libtpu: 0.0.40
codegen_flags: <defaults>
</compile_context>

<pallas_src>
import jax
import jax.numpy as jnp
from jax.experimental import pallas as pl
from jax.experimental.pallas import tpu as pltpu

H_RAW = 40     # nn.Linear(entry_size, 40)
O_RAW = 361    # nn.Linear(40, 361)
H_PAD = 128    # lane-dense hidden width
O_PAD = 384    # 3 * 128 lane-dense output width


def _round_up(n, m):
    return ((n + m - 1) // m) * m


def _mlp_kernel(x_ref, w1_ref, b1_ref, w2_ref, b2_ref, o_ref):
    # z1 = relu(x @ W1 + b1)     (MXU matmul, f32 accumulate)
    z1 = jnp.dot(x_ref[...], w1_ref[...], preferred_element_type=jnp.float32)
    z1 = jnp.maximum(z1 + b1_ref[...], 0.0)
    # y = relu(z1 @ W2 + b2)
    z2 = jnp.dot(z1.astype(w2_ref.dtype), w2_ref[...],
                 preferred_element_type=jnp.float32)
    o_ref[...] = jnp.maximum(z2 + b2_ref[...], 0.0).astype(o_ref.dtype)


def prepare_params(w1, b1, w2, b2, compute_dtype=jnp.bfloat16):
    """One-time parameter prep (hoisted out of the per-call hot path).

    Torch convention in:  w1 (40, E), b1 (40,), w2 (361, 40), b2 (361,).
    Returns weights transposed to (in, out), zero-padded to lane-dense
    widths (H_PAD / O_PAD) and cast to the MXU compute dtype; biases stay f32.
    Zero padding keeps the math exact: padded z1 columns are relu(0)=0 and the
    corresponding (zero) rows of W2 contribute nothing.
    """
    E = w1.shape[1]
    w1_t = jnp.zeros((E, H_PAD), compute_dtype).at[:, :H_RAW].set(
        jnp.asarray(w1, jnp.float32).T.astype(compute_dtype))
    b1_p = jnp.zeros((1, H_PAD), jnp.float32).at[:, :H_RAW].set(
        jnp.asarray(b1, jnp.float32).reshape(1, H_RAW))
    w2_t = jnp.zeros((H_PAD, O_PAD), compute_dtype).at[:H_RAW, :O_RAW].set(
        jnp.asarray(w2, jnp.float32).T.astype(compute_dtype))
    b2_p = jnp.zeros((1, O_PAD), jnp.float32).at[:, :O_RAW].set(
        jnp.asarray(b2, jnp.float32).reshape(1, O_RAW))
    return w1_t, b1_p, w2_t, b2_p


def model_img_to_sgf_forward(x, params, *, block_b=1024,
                             compute_dtype=jnp.bfloat16):
    """x: (B, E); params from `prepare_params`. Returns (B, 361) f32."""
    w1_t, b1_p, w2_t, b2_p = params
    B, E = x.shape

    # Batch tile: multiple of 8 sublanes, capped at block_b (HBM-roofline sweet
    # spot ~512-2048 rows); pad B up to a multiple of the tile.
    tb = min(block_b, _round_up(B, 8))
    b_pad = _round_up(B, tb)

    x_c = jnp.asarray(x).astype(compute_dtype)
    if b_pad != B:
        x_c = jnp.pad(x_c, ((0, b_pad - B), (0, 0)))

    # TODO(synk): at tiny deployed batches (B~8) the pallas_call launch/DMA
    # overhead dominates; amortize by batching rows per call or fusing upstream.
    y_full = pl.pallas_call(
        _mlp_kernel,
        out_shape=jax.ShapeDtypeStruct((b_pad, O_PAD), jnp.float32),
        grid=(b_pad // tb,),
        in_specs=[
            pl.BlockSpec((tb, E), lambda i: (i, 0)),          # streamed x
            pl.BlockSpec((E, H_PAD), lambda i: (0, 0)),       # resident W1^T
            pl.BlockSpec((1, H_PAD), lambda i: (0, 0)),       # resident b1
            pl.BlockSpec((H_PAD, O_PAD), lambda i: (0, 0)),   # resident W2^T
            pl.BlockSpec((1, O_PAD), lambda i: (0, 0)),       # resident b2
        ],
        out_specs=pl.BlockSpec((tb, O_PAD), lambda i: (i, 0)),
        compiler_params=pltpu.CompilerParams(
            dimension_semantics=("parallel",)),
    )(x_c, w1_t, b1_p, w2_t, b2_p)

    return y_full[:B, :O_RAW]


def init_params(key, entry_size):
    """torch.nn.Linear-style init/shapes: W ~ U(-1/sqrt(fan_in), 1/sqrt(fan_in))."""
    k1, k2, k3, k4 = jax.random.split(key, 4)
    bound1 = 1.0 / jnp.sqrt(float(entry_size))
    bound2 = 1.0 / jnp.sqrt(float(H_RAW))
    w1 = jax.random.uniform(k1, (H_RAW, entry_size), jnp.float32, -bound1, bound1)
    b1 = jax.random.uniform(k2, (H_RAW,), jnp.float32, -bound1, bound1)
    w2 = jax.random.uniform(k3, (O_RAW, H_RAW), jnp.float32, -bound2, bound2)
    b2 = jax.random.uniform(k4, (O_RAW,), jnp.float32, -bound2, bound2)
    return w1, b1, w2, b2


if __name__ == "__main__":
    key = jax.random.PRNGKey(0)
    kx, kx2, kp = jax.random.split(key, 3)

    entry_size = 32
    w1, b1, w2, b2 = init_params(kp, entry_size)
    params = prepare_params(w1, b1, w2, b2)     # one-time prep (not hot path)

    def ref_fn(x):
        return jnp.maximum(jnp.maximum(x @ w1.T + b1, 0.0) @ w2.T + b2, 0.0)

    # Case 1: small batch, divisible by 8.
    x = jax.random.normal(kx, (8, entry_size), jnp.float32)
    y = jax.block_until_ready(model_img_to_sgf_forward(x, params))
    assert y.shape == (8, O_RAW)
    assert jnp.allclose(y, ref_fn(x), atol=5e-2, rtol=5e-2)   # bf16 MXU inputs

    # Case 2: batch not a multiple of 8 (exercises the padding / tail path).
    x2 = jax.random.normal(kx2, (20, entry_size), jnp.float32)
    y2 = jax.block_until_ready(model_img_to_sgf_forward(x2, params))
    assert y2.shape == (20, O_RAW)
    assert jnp.allclose(y2, ref_fn(x2), atol=5e-2, rtol=5e-2)

    print("KERNEL_OK")
</pallas_src>

<mosaic_0001>
module attributes {stable_mosaic.version = 11 : i64} {
  func.func @_mlp_kernel(%arg0: i32, %arg1: memref<8x32xbf16, #tpu.memory_space<vmem>>, %arg2: memref<32x128xbf16, #tpu.memory_space<vmem>>, %arg3: memref<1x128xf32, #tpu.memory_space<vmem>>, %arg4: memref<128x384xbf16, #tpu.memory_space<vmem>>, %arg5: memref<1x384xf32, #tpu.memory_space<vmem>>, %arg6: memref<8x384xf32, #tpu.memory_space<vmem>>) attributes {dimension_semantics = [#tpu.dimension_semantics<parallel>], iteration_bounds = array<i64: 1>, scalar_prefetch = 0 : i64, scratch_operands = 0 : i64, tpu.core_type = #tpu.core_type<tc>, window_params = [{transform_indices = @transform_0, window_bounds = array<i64: 8, 32>}, {pipeline_mode = #tpu.pipeline_mode<synchronous>, transform_indices = @transform_1, window_bounds = array<i64: 32, 128>}, {pipeline_mode = #tpu.pipeline_mode<synchronous>, transform_indices = @transform_2, window_bounds = array<i64: 1, 128>}, {pipeline_mode = #tpu.pipeline_mode<synchronous>, transform_indices = @transform_3, window_bounds = array<i64: 128, 384>}, {pipeline_mode = #tpu.pipeline_mode<synchronous>, transform_indices = @transform_4, window_bounds = array<i64: 1, 384>}, {transform_indices = @transform_5, window_bounds = array<i64: 8, 384>}]} {
    %c0 = arith.constant 0 : index
    %c0_0 = arith.constant 0 : index
    %0 = vector.load %arg1[%c0, %c0_0] : memref<8x32xbf16, #tpu.memory_space<vmem>>, vector<8x32xbf16>
    %c0_1 = arith.constant 0 : index
    %c0_2 = arith.constant 0 : index
    %1 = vector.load %arg2[%c0_1, %c0_2] : memref<32x128xbf16, #tpu.memory_space<vmem>>, vector<32x128xbf16>
    %cst = arith.constant dense<0.000000e+00> : vector<8x128xf32>
    %2 = tpu.matmul %0, %1, %cst {dimension_numbers = #tpu.dot_dimension_numbers<[1], [0], [0], [1], [0, 0, 1, 1], [], []>} : vector<8x32xbf16>, vector<32x128xbf16>, vector<8x128xf32> -> vector<8x128xf32>
    %c0_3 = arith.constant 0 : index
    %c0_4 = arith.constant 0 : index
    %3 = vector.load %arg3[%c0_3, %c0_4] : memref<1x128xf32, #tpu.memory_space<vmem>>, vector<1x128xf32>
    %4 = vector.broadcast %3 : vector<1x128xf32> to vector<8x128xf32>
    %5 = arith.addf %2, %4 : vector<8x128xf32>
    %cst_5 = arith.constant 0.000000e+00 : f32
    %6 = vector.broadcast %cst_5 : f32 to vector<8x128xf32>
    %7 = arith.maximumf %5, %6 : vector<8x128xf32>
    %8 = arith.truncf %7 : vector<8x128xf32> to vector<8x128xbf16>
    %c0_6 = arith.constant 0 : index
    %c0_7 = arith.constant 0 : index
    %9 = vector.load %arg4[%c0_6, %c0_7] : memref<128x384xbf16, #tpu.memory_space<vmem>>, vector<128x384xbf16>
    %cst_8 = arith.constant dense<0.000000e+00> : vector<8x384xf32>
    %10 = tpu.matmul %8, %9, %cst_8 {dimension_numbers = #tpu.dot_dimension_numbers<[1], [0], [0], [1], [0, 0, 1, 1], [], []>} : vector<8x128xbf16>, vector<128x384xbf16>, vector<8x384xf32> -> vector<8x384xf32>
    %c0_9 = arith.constant 0 : index
    %c0_10 = arith.constant 0 : index
    %11 = vector.load %arg5[%c0_9, %c0_10] : memref<1x384xf32, #tpu.memory_space<vmem>>, vector<1x384xf32>
    %12 = vector.broadcast %11 : vector<1x384xf32> to vector<8x384xf32>
    %13 = arith.addf %10, %12 : vector<8x384xf32>
    %cst_11 = arith.constant 0.000000e+00 : f32
    %14 = vector.broadcast %cst_11 : f32 to vector<8x384xf32>
    %15 = arith.maximumf %13, %14 : vector<8x384xf32>
    %c0_12 = arith.constant 0 : index
    %c0_13 = arith.constant 0 : index
    %16 = vector.load %arg6[%c0_12, %c0_13] : memref<8x384xf32, #tpu.memory_space<vmem>>, vector<8x384xf32>
    tpu.vector_store %arg6[%c0_12, %c0_13], %15 {strides = array<i32>} : memref<8x384xf32, #tpu.memory_space<vmem>>, vector<8x384xf32>,
    return
  }
  func.func @transform_0(%arg0: i32) -> (i32, i32) {
    %c0_i32 = arith.constant 0 : i32
    %c0_i32_0 = arith.constant 0 : i32
    return %arg0, %c0_i32 : i32, i32
  }
  func.func @transform_1(%arg0: i32) -> (i32, i32) {
    %c0_i32 = arith.constant 0 : i32
    %c0_i32_0 = arith.constant 0 : i32
    %c0_i32_1 = arith.constant 0 : i32
    return %c0_i32, %c0_i32_0 : i32, i32
  }
  func.func @transform_2(%arg0: i32) -> (i32, i32) {
    %c0_i32 = arith.constant 0 : i32
    %c0_i32_0 = arith.constant 0 : i32
    %c0_i32_1 = arith.constant 0 : i32
    return %c0_i32, %c0_i32_0 : i32, i32
  }
  func.func @transform_3(%arg0: i32) -> (i32, i32) {
    %c0_i32 = arith.constant 0 : i32
    %c0_i32_0 = arith.constant 0 : i32
    %c0_i32_1 = arith.constant 0 : i32
    return %c0_i32, %c0_i32_0 : i32, i32
  }
  func.func @transform_4(%arg0: i32) -> (i32, i32) {
    %c0_i32 = arith.constant 0 : i32
    %c0_i32_0 = arith.constant 0 : i32
    %c0_i32_1 = arith.constant 0 : i32
    return %c0_i32, %c0_i32_0 : i32, i32
  }
  func.func @transform_5(%arg0: i32) -> (i32, i32) {
    %c0_i32 = arith.constant 0 : i32
    %c0_i32_0 = arith.constant 0 : i32
    return %arg0, %c0_i32 : i32, i32
  }
}

</mosaic_0001>

<llo_original>
// kernel: tpu_custom_call.1
$region0: #{tpu_custom_call.1}
  #allocation0 [shape = 'u32[]', space=smem, size = 0x4, offset = 0x4, fixed_abs, tag = 'smem constant byte address 0x4 - core index']
  #allocation1 [shape = 'u32[144,128]{1,0:T(1,128)}', space=vmem, size = 0x12000, scoped, tag = 'internal scratch']
  %s0 = inlined_call_operand.hbm [shape: bf16[8,32], index: 0, kind: input, shape index: {}]
  %s1 = inlined_call_operand.hbm [shape: bf16[32,128], index: 1, kind: input, shape index: {}]
  %s2 = inlined_call_operand.vmem [shape: f32[1,128], index: 2, kind: input, shape index: {}]
  %s3 = inlined_call_operand.hbm [shape: bf16[128,384], index: 3, kind: input, shape index: {}]
  %s4 = inlined_call_operand.vmem [shape: f32[1,384], index: 4, kind: input, shape index: {}]
  %s5 = inlined_call_operand.hbm [shape: f32[8,384], index: 5, kind: output, shape index: {}]
  %s6 = sld [smem:[#allocation0]]
  $region42: #{tpu_custom_call.1} parent=0
    _
  %s8 = ssub.s32 1, %s6
  %s9 = scalar_select 0, %s8, %s6
  $region1: #{tpu_custom_call.1} parent=0
    #allocation2 [shape = 'u8[2048]{0}', space=vmem, size = 0x800, scoped, tag = 'input window, operand 0, single buffered']
    #allocation3 [shape = 's32[1]{0}', space=sflag, size = 0x4, scoped, tag = 'scoped memory for tpu_custom_call.1']
    #allocation4 [shape = 's32[1]{0}', space=sflag, size = 0x4, scoped, tag = 'scoped memory for tpu_custom_call.1']
    #allocation5 [shape = 'u8[8192]{0}', space=vmem, size = 0x2000, scoped, tag = 'input window, operand 1, single buffered']
    #allocation6 [shape = 's32[1]{0}', space=sflag, size = 0x4, scoped, tag = 'scoped memory for tpu_custom_call.1']
    #allocation7 [shape = 'u8[98304]{0}', space=vmem, size = 0x18000, scoped, tag = 'input window, operand 3, single buffered']
    #allocation8 [shape = 'u8[12288]{0}', space=vmem, size = 0x3000, scoped, tag = 'output window, operand 0, single buffered']
    %10 = vsyncpa [#allocation3], 0
    %11 = vsyncpa [#allocation6], 0
    %12 = vsyncpa [#allocation4], 0
    // Predicated region
    $region2: #{tpu_custom_call.1} parent=1 // pred_check
      _
    $region3: #{tpu_custom_call.1} parent=1 // pred_check_branch
      %14 = sbr.rel (0) target = $region5
    $region4: #{tpu_custom_call.1} parent=1 // pred_region
      %s16 = ssub.s32 64, 64
      %17 = vsyncadd [#allocation3], %s16
      %s19 = sshll.u32 [#allocation2], 4
      %s20 = int_to_ptr.vmem [resolvable:$true] %s19
      %22 = dma.hbm_to_vmem [thread:$0]  %s0, 64, %s20, [#allocation3]
    $region5: #{tpu_custom_call.1} parent=1 // pred_fallthru
      _
    // Predicated region
    $region6: #{tpu_custom_call.1} parent=1 // pred_check
      _
    $region7: #{tpu_custom_call.1} parent=1 // pred_check_branch
      %24 = sbr.rel (0) target = $region9
    $region8: #{tpu_custom_call.1} parent=1 // pred_region
      %s26 = ssub.s32 256, 256
      %27 = vsyncadd [#allocation6], %s26
      %s28 = sshll.u32 [#allocation5], 4
      %s29 = int_to_ptr.vmem [resolvable:$true] %s28
      %34 = dma.hbm_to_vmem [thread:$0]  %s1, 256, %s29, [#allocation6], 64, 64, 4
    $region9: #{tpu_custom_call.1} parent=1 // pred_fallthru
      _
    // Predicated region
    $region10: #{tpu_custom_call.1} parent=1 // pred_check
      _
    $region11: #{tpu_custom_call.1} parent=1 // pred_check_branch
      %36 = sbr.rel (0) target = $region13
    $region12: #{tpu_custom_call.1} parent=1 // pred_region
      _
    $region13: #{tpu_custom_call.1} parent=1 // pred_fallthru
      _
    // Predicated region
    $region14: #{tpu_custom_call.1} parent=1 // pred_check
      _
    $region15: #{tpu_custom_call.1} parent=1 // pred_check_branch
      %38 = sbr.rel (0) target = $region17
    $region16: #{tpu_custom_call.1} parent=1 // pred_region
      %s40 = ssub.s32 3072, 3072
      %41 = vsyncadd [#allocation6], %s40
      %s42 = sshll.u32 [#allocation7], 4
      %s43 = int_to_ptr.vmem [resolvable:$true] %s42
      %48 = dma.hbm_to_vmem [thread:$0]  %s3, 3072, %s43, [#allocation6], 192, 192, 12
    $region17: #{tpu_custom_call.1} parent=1 // pred_fallthru
      _
    // Predicated region
    $region18: #{tpu_custom_call.1} parent=1 // pred_check
      _
    $region19: #{tpu_custom_call.1} parent=1 // pred_check_branch
      %50 = sbr.rel (0) target = $region21
    $region20: #{tpu_custom_call.1} parent=1 // pred_region
      _
    $region21: #{tpu_custom_call.1} parent=1 // pred_fallthru
      _
    // Predicated region
    $region22: #{tpu_custom_call.1} parent=1 // pred_check
      _
    $region23: #{tpu_custom_call.1} parent=1 // pred_check_branch
      %52 = sbr.rel (0) target = $region25
    $region24: #{tpu_custom_call.1} parent=1 // pred_region
      %53 = dma.done [#allocation3], 64
    $region25: #{tpu_custom_call.1} parent=1 // pred_fallthru
      _
    // Predicated region
    $region26: #{tpu_custom_call.1} parent=1 // pred_check
      _
    $region27: #{tpu_custom_call.1} parent=1 // pred_check_branch
      %55 = sbr.rel (0) target = $region29
    $region28: #{tpu_custom_call.1} parent=1 // pred_region
      %56 = dma.done [#allocation6], 256
    $region29: #{tpu_custom_call.1} parent=1 // pred_fallthru
      _
    // Predicated region
    $region30: #{tpu_custom_call.1} parent=1 // pred_check
      _
    $region31: #{tpu_custom_call.1} parent=1 // pred_check_branch
      %58 = sbr.rel (0) target = $region33
    $region32: #{tpu_custom_call.1} parent=1 // pred_region
      %59 = dma.done [#allocation6], 3072
    $region33: #{tpu_custom_call.1} parent=1 // pred_fallthru
      _
    %v61 = vld [vmem:[#allocation2] sm:$0xf]
    %v62 = vld [vmem:[#allocation5] sm:$0xf]
    %v63 = vld [vmem:[#allocation5 + $0x4] sm:$0xf]
    %v64 = vld [vmem:[#allocation5 + $0x8] sm:$0xf]
    %v65 = vld [vmem:[#allocation5 + $0xc] sm:$0xf]
    %v66 = vld [vmem:[%s2] sm:$0x1]
    %v68 = vlaneseq
    %v69 = vshrl.u32 %v68, 7
    %v70 = vsub.s32 0, %v69
    %v71 = vrot.slane %v66, %v70
    %v77 = vunpack.c.l.b16 %v62
    %v78 = vunpack.c.l.b16 %v63
    %v79 = vunpack.c.l.b16 %v64
    %v80 = vunpack.c.l.b16 %v65
    %v81 = vpack.c.b16 %v78, %v77
    %v82 = vpack.c.b16 %v80, %v79
    %vm85 = vcmask 261120
    %v87 = vsel %vm85, %v61, 0
    %89 = vmatprep.subr.bf16.mxu0 0
    %90 = vmatpush1.bf16.msra.mxu0 %v81
    %91 = vmatprep.subr.bf16.mxu0 0
    %92 = vmatpush1.bf16.msra.mxu0 %v82
    %93 = vmatprep.subr.bf16.mxu0 0
    %94 = vmatpush1.bf16.msra.mxu0 0
    %95 = vmatprep.subr.bf16.mxu0 0
    %96 = vmatpush1.bf16.msra.mxu0 0
    %97 = vmatprep.subr.bf16.mxu0 0
    %98 = vmatpush1.bf16.msra.mxu0 0
    %99 = vmatprep.subr.bf16.mxu0 0
    %100 = vmatpush1.bf16.msra.mxu0 0
    %101 = vmatprep.subr.bf16.mxu0 0
    %102 = vmatpush1.bf16.msra.mxu0 0
    %103 = vmatprep.subr.bf16.mxu0 0
    %104 = vmatpush1.bf16.msra.mxu0 0
    %105 = vmatprep.subr.bf16.mxu0 0
    %106 = vmatpush1.bf16.msra.mxu0 0
    %107 = vmatprep.subr.bf16.mxu0 0
    %108 = vmatpush1.bf16.msra.mxu0 0
    %109 = vmatprep.subr.bf16.mxu0 0
    %110 = vmatpush1.bf16.msra.mxu0 0
    %111 = vmatprep.subr.bf16.mxu0 0
    %112 = vmatpush1.bf16.msra.mxu0 0
    %113 = vmatprep.subr.bf16.mxu0 0
    %114 = vmatpush1.bf16.msra.mxu0 0
    %115 = vmatprep.subr.bf16.mxu0 0
    %116 = vmatpush1.bf16.msra.mxu0 0
    %117 = vmatprep.subr.bf16.mxu0 0
    %118 = vmatpush1.bf16.msra.mxu0 0
    %119 = vmatprep.subr.bf16.mxu0 0
    %120 = vmatpush1.bf16.msra.mxu0 0
    %121 = vmatprep.mubr.bf16.mxu0 0
    %122 = vmatmul.mubr.bf16.gmra.mrb[0].mxu0 %v87
    %v123 = vpop.f32.mrb[0].mxu0
    %v124 = vadd.f32 %v71, %v123
    %v125 = vpop.f32.mrb[0].mxu0
    %v126 = vpop.f32.mrb[0].mxu0
    %v127 = vpop.f32.mrb[0].mxu0
    %128 = vdwg.mxu0
    %v129 = vmax.f32 %v124, 0.0
    %v130 = vpack.c.bf16 %v129, %v129
    %v131 = vld [vmem:[#allocation7] sm:$0xff]
    %v132 = vld [vmem:[#allocation7 + $0x8] sm:$0xf]
    %v133 = vld [vmem:[#allocation7 + $0xc] sm:$0xff]
    %v134 = vld [vmem:[#allocation7 + $0x14] sm:$0xf]
    %v135 = vld [vmem:[#allocation7 + $0x18] sm:$0xff]
    %v136 = vld [vmem:[#allocation7 + $0x20] sm:$0xf]
    %v137 = vld [vmem:[#allocation7 + $0x24] sm:$0xff]
    %v138 = vld [vmem:[#allocation7 + $0x2c] sm:$0xf]
    %v139 = vld [vmem:[#allocation7 + $0x30] sm:$0xff]
    %v140 = vld [vmem:[#allocation7 + $0x38] sm:$0xf]
    %v141 = vld [vmem:[#allocation7 + $0x3c] sm:$0xff]
    %v142 = vld [vmem:[#allocation7 + $0x44] sm:$0xf]
    %v143 = vld [vmem:[#allocation7 + $0x48] sm:$0xff]
    %v144 = vld [vmem:[#allocation7 + $0x50] sm:$0xf]
    %v145 = vld [vmem:[#allocation7 + $0x54] sm:$0xff]
    %v146 = vld [vmem:[#allocation7 + $0x5c] sm:$0xf]
    %v147 = vld [vmem:[#allocation7 + $0x60] sm:$0xff]
    %v148 = vld [vmem:[#allocation7 + $0x68] sm:$0xf]
    %v149 = vld [vmem:[#allocation7 + $0x6c] sm:$0xff]
    %v150 = vld [vmem:[#allocation7 + $0x74] sm:$0xf]
    %v151 = vld [vmem:[#allocation7 + $0x78] sm:$0xff]
    %v152 = vld [vmem:[#allocation7 + $0x80] sm:$0xf]
    %v153 = vld [vmem:[#allocation7 + $0x84] sm:$0xff]
    %v154 = vld [vmem:[#allocation7 + $0x8c] sm:$0xf]
    %v155 = vld [vmem:[#allocation7 + $0x90] sm:$0xff]
    %v156 = vld [vmem:[#allocation7 + $0x98] sm:$0xf]
    %v157 = vld [vmem:[#allocation7 + $0x9c] sm:$0xff]
    %v158 = vld [vmem:[#allocation7 + $0xa4] sm:$0xf]
    %v159 = vld [vmem:[#allocation7 + $0xa8] sm:$0xff]
    %v160 = vld [vmem:[#allocation7 + $0xb0] sm:$0xf]
    %v161 = vld [vmem:[#allocation7 + $0xb4] sm:$0xff]
    %v162 = vld [vmem:[#allocation7 + $0xbc] sm:$0xf]
    %v163 = vld [vmem:[%s4] sm:$0x7]
    %v165 = vlaneseq
    %v166 = vshrl.u32 %v165, 7
    %v167 = vsub.s32 0, %v166
    %v168 = vrot.slane %v163, %v167
    %v169 = vlaneseq
    %v170 = vshrl.u32 %v169, 7
    %v171 = vsub.s32 1, %v170
    %v172 = vrot.slane %v163, %v171
    %v173 = vlaneseq
    %v174 = vshrl.u32 %v173, 7
    %v175 = vsub.s32 2, %v174
    %v176 = vrot.slane %v163, %v175
    %v212 = vunpack.c.l.b16 %v131
    %v213 = vunpack.c.h.b16 %v131
    %v214 = vunpack.c.l.b16 %v132
    %v215 = vunpack.c.l.b16 %v133
    %v216 = vunpack.c.h.b16 %v133
    %v217 = vunpack.c.l.b16 %v134
    %v218 = vunpack.c.l.b16 %v135
    %v219 = vunpack.c.h.b16 %v135
    %v220 = vunpack.c.l.b16 %v136
    %v221 = vunpack.c.l.b16 %v137
    %v222 = vunpack.c.h.b16 %v137
    %v223 = vunpack.c.l.b16 %v138
    %v224 = vunpack.c.l.b16 %v139
    %v225 = vunpack.c.h.b16 %v139
    %v226 = vunpack.c.l.b16 %v140
    %v227 = vunpack.c.l.b16 %v141
    %v228 = vunpack.c.h.b16 %v141
    %v229 = vunpack.c.l.b16 %v142
    %v230 = vunpack.c.l.b16 %v143
    %v231 = vunpack.c.h.b16 %v143
    %v232 = vunpack.c.l.b16 %v144
    %v233 = vunpack.c.l.b16 %v145
    %v234 = vunpack.c.h.b16 %v145
    %v235 = vunpack.c.l.b16 %v146
    %v236 = vunpack.c.l.b16 %v147
    %v237 = vunpack.c.h.b16 %v147
    %v238 = vunpack.c.l.b16 %v148
    %v239 = vunpack.c.l.b16 %v149
    %v240 = vunpack.c.h.b16 %v149
    %v241 = vunpack.c.l.b16 %v150
    %v242 = vunpack.c.l.b16 %v151
    %v243 = vunpack.c.h.b16 %v151
    %v244 = vunpack.c.l.b16 %v152
    %v245 = vunpack.c.l.b16 %v153
    %v246 = vunpack.c.h.b16 %v153
    %v247 = vunpack.c.l.b16 %v154
    %v248 = vunpack.c.l.b16 %v155
    %v249 = vunpack.c.h.b16 %v155
    %v250 = vunpack.c.l.b16 %v156
    %v251 = vunpack.c.l.b16 %v157
    %v252 = vunpack.c.h.b16 %v157
    %v253 = vunpack.c.l.b16 %v158
    %v254 = vunpack.c.l.b16 %v159
    %v255 = vunpack.c.h.b16 %v159
    %v256 = vunpack.c.l.b16 %v160
    %v257 = vunpack.c.l.b16 %v161
    %v258 = vunpack.c.h.b16 %v161
    %v259 = vunpack.c.l.b16 %v162
    %v260 = vpack.c.b16 %v215, %v212
    %v261 = vpack.c.b16 %v216, %v213
    %v262 = vpack.c.b16 %v217, %v214
    %v263 = vpack.c.b16 %v221, %v218
    %v264 = vpack.c.b16 %v222, %v219
    %v265 = vpack.c.b16 %v223, %v220
    %v266 = vpack.c.b16 %v227, %v224
    %v267 = vpack.c.b16 %v228, %v225
    %v268 = vpack.c.b16 %v229, %v226
    %v269 = vpack.c.b16 %v233, %v230
    %v270 = vpack.c.b16 %v234, %v231
    %v271 = vpack.c.b16 %v235, %v232
    %v272 = vpack.c.b16 %v239, %v236
    %v273 = vpack.c.b16 %v240, %v237
    %v274 = vpack.c.b16 %v241, %v238
    %v275 = vpack.c.b16 %v245, %v242
    %v276 = vpack.c.b16 %v246, %v243
    %v277 = vpack.c.b16 %v247, %v244
    %v278 = vpack.c.b16 %v251, %v248
    %v279 = vpack.c.b16 %v252, %v249
    %v280 = vpack.c.b16 %v253, %v250
    %v281 = vpack.c.b16 %v257, %v254
    %v282 = vpack.c.b16 %v258, %v255
    %v283 = vpack.c.b16 %v259, %v256
    %308 = vmatprep.subr.bf16.mxu0 %v261
    %309 = vmatpush1.bf16.msra.mxu0 %v260
    %310 = vmatprep.subr.bf16.mxu0 %v264
    %311 = vmatpush1.bf16.msra.mxu0 %v263
    %312 = vmatprep.subr.bf16.mxu0 %v267
    %313 = vmatpush1.bf16.msra.mxu0 %v266
    %314 = vmatprep.subr.bf16.mxu0 %v270
    %315 = vmatpush1.bf16.msra.mxu0 %v269
    %316 = vmatprep.subr.bf16.mxu0 %v273
    %317 = vmatpush1.bf16.msra.mxu0 %v272
    %318 = vmatprep.subr.bf16.mxu0 %v276
    %319 = vmatpush1.bf16.msra.mxu0 %v275
    %320 = vmatprep.subr.bf16.mxu0 %v279
    %321 = vmatpush1.bf16.msra.mxu0 %v278
    %322 = vmatprep.subr.bf16.mxu0 %v282
    %323 = vmatpush1.bf16.msra.mxu0 %v281
    %324 = vmatprep.subr.bf16.mxu0 0
    %325 = vmatpush1.bf16.msra.mxu0 0
    %326 = vmatprep.subr.bf16.mxu0 0
    %327 = vmatpush1.bf16.msra.mxu0 0
    %328 = vmatprep.subr.bf16.mxu0 0
    %329 = vmatpush1.bf16.msra.mxu0 0
    %330 = vmatprep.subr.bf16.mxu0 0
    %331 = vmatpush1.bf16.msra.mxu0 0
    %332 = vmatprep.subr.bf16.mxu0 0
    %333 = vmatpush1.bf16.msra.mxu0 0
    %334 = vmatprep.subr.bf16.mxu0 0
    %335 = vmatpush1.bf16.msra.mxu0 0
    %336 = vmatprep.subr.bf16.mxu0 0
    %337 = vmatpush1.bf16.msra.mxu0 0
    %338 = vmatprep.subr.bf16.mxu0 0
    %339 = vmatpush1.bf16.msra.mxu0 0
    %340 = vmatprep.mubr.bf16.mxu0 0
    %341 = vmatmul.mubr.bf16.gmra.mrb[0].mxu0 %v130
    %v342 = vpop.f32.mrb[0].mxu0
    %v343 = vadd.f32 %v168, %v342
    %v344 = vpop.f32.mrb[0].mxu0
    %v345 = vadd.f32 %v172, %v344
    %v346 = vpop.f32.mrb[0].mxu0
    %v347 = vpop.f32.mrb[0].mxu0
    %348 = vdwg.mxu0
    %349 = vmatprep.subr.bf16.mxu0 0
    %350 = vmatpush1.bf16.msra.mxu0 %v262
    %351 = vmatprep.subr.bf16.mxu0 0
    %352 = vmatpush1.bf16.msra.mxu0 %v265
    %353 = vmatprep.subr.bf16.mxu0 0
    %354 = vmatpush1.bf16.msra.mxu0 %v268
    %355 = vmatprep.subr.bf16.mxu0 0
    %356 = vmatpush1.bf16.msra.mxu0 %v271
    %357 = vmatprep.subr.bf16.mxu0 0
    %358 = vmatpush1.bf16.msra.mxu0 %v274
    %359 = vmatprep.subr.bf16.mxu0 0
    %360 = vmatpush1.bf16.msra.mxu0 %v277
    %361 = vmatprep.subr.bf16.mxu0 0
    %362 = vmatpush1.bf16.msra.mxu0 %v280
    %363 = vmatprep.subr.bf16.mxu0 0
    %364 = vmatpush1.bf16.msra.mxu0 %v283
    %365 = vmatprep.subr.bf16.mxu0 0
    %366 = vmatpush1.bf16.msra.mxu0 0
    %367 = vmatprep.subr.bf16.mxu0 0
    %368 = vmatpush1.bf16.msra.mxu0 0
    %369 = vmatprep.subr.bf16.mxu0 0
    %370 = vmatpush1.bf16.msra.mxu0 0
    %371 = vmatprep.subr.bf16.mxu0 0
    %372 = vmatpush1.bf16.msra.mxu0 0
    %373 = vmatprep.subr.bf16.mxu0 0
    %374 = vmatpush1.bf16.msra.mxu0 0
    %375 = vmatprep.subr.bf16.mxu0 0
    %376 = vmatpush1.bf16.msra.mxu0 0
    %377 = vmatprep.subr.bf16.mxu0 0
    %378 = vmatpush1.bf16.msra.mxu0 0
    %379 = vmatprep.subr.bf16.mxu0 0
    %380 = vmatpush1.bf16.msra.mxu0 0
    %381 = vmatprep.mubr.bf16.mxu0 0
    %382 = vmatmul.mubr.bf16.gmra.mrb[0].mxu0 %v130
    %v383 = vpop.f32.mrb[0].mxu0
    %v384 = vadd.f32 %v176, %v383
    %v385 = vpop.f32.mrb[0].mxu0
    %v386 = vpop.f32.mrb[0].mxu0
    %v387 = vpop.f32.mrb[0].mxu0
    %388 = vdwg.mxu0
    %v389 = vmax.f32 %v343, 0.0
    %v390 = vmax.f32 %v345, 0.0
    %v391 = vmax.f32 %v384, 0.0
    %392 = vst [vmem:[#allocation8] sm:$0xff] %v389
    %393 = vst [vmem:[#allocation8 + $0x8] sm:$0xff] %v390
    %394 = vst [vmem:[#allocation8 + $0x10] sm:$0xff] %v391
    // Predicated region
    $region34: #{tpu_custom_call.1} parent=1 // pred_check
      _
    $region35: #{tpu_custom_call.1} parent=1 // pred_check_branch
      %396 = sbr.rel (0) target = $region37
    $region36: #{tpu_custom_call.1} parent=1 // pred_region
      %s398 = ssub.s32 384, 384
      %399 = vsyncadd [#allocation4], %s398
      %s401 = sshll.u32 [#allocation8], 4
      %s402 = int_to_ptr.vmem [resolvable:$true] %s401
      %404 = dma.vmem_to_hbm [thread:$0]  %s402, 384, %s5, [#allocation4]
    $region37: #{tpu_custom_call.1} parent=1 // pred_fallthru
      _
    // Predicated region
    $region38: #{tpu_custom_call.1} parent=1 // pred_check
      _
    $region39: #{tpu_custom_call.1} parent=1 // pred_check_branch
      %406 = sbr.rel (0) target = $region41
    $region40: #{tpu_custom_call.1} parent=1 // pred_region
      %407 = dma.done [#allocation4], 384
    $region41: #{tpu_custom_call.1} parent=1 // pred_fallthru
      _
    %408 = vsyncpa [#allocation3], 1
    %409 = vsyncpa [#allocation6], 1
    %410 = vsyncpa [#allocation4], 1

</llo_original>
